<compile_context>
chip_gen: v5e
topology: v5e:2x2
jax: 0.10.0
libtpu: 0.0.40
codegen_flags: <defaults>
</compile_context>

<pallas_src>
import functools

import jax
import jax.numpy as jnp
from jax.experimental import pallas as pl
from jax.experimental.pallas import tpu as pltpu

_LANE = 128
_SUBLANE = 8
_TILE_CANDIDATES = (2048, 1024, 512, 256)  # rows per block; 2048 rows of f32 = 1 MiB


def _round_up(a: int, b: int) -> int:
    return (a + b - 1) // b * b


def _choose_tiling(n: int) -> tuple[int, int]:
    """Return (tile_rows, padded_rows) for a lane-dense (rows, 128) slab."""
    rows = _round_up(pl.cdiv(n, _LANE), _SUBLANE)
    for t in _TILE_CANDIDATES:
        if rows % t == 0:
            return t, rows
    if rows <= _TILE_CANDIDATES[0]:
        return rows, rows                       # single (8,128)-aligned block
    t = _TILE_CANDIDATES[-1]
    return t, _round_up(rows, t)                # small pad, keeps >=128 KiB tiles


def _temperature_reshape(x, temperature: float):
    """x -> (sign(2x-1) * |2x-1|**T + 1) / 2, matching the PyTorch branch."""
    if temperature == 1.0:
        return x
    xm = x * 2.0 - 1.0
    s = jnp.sign(xm)
    a = jnp.abs(xm)
    if temperature == 0.5:
        p = jnp.sqrt(a)
    elif temperature == 2.0:
        p = a * a
    else:
        p = jnp.power(a, jnp.float32(temperature))
    return (s * p + 1.0) * 0.5


def _sampler_kernel_hwprng(seed_ref, x_ref, o_ref, *, temperature: float, use_ste: bool):
    # Per-block seed -> blocks are independent, so the grid axis can be "parallel"
    # (shards across both TensorCores on v7x) without identical random streams.
    pltpu.prng_seed(seed_ref[0] + pl.program_id(0))
    x = _temperature_reshape(x_ref[...].astype(jnp.float32), temperature)
    bits = pltpu.bitcast(pltpu.prng_random_bits(x.shape), jnp.uint32)
    # Mantissa trick: uniform in [0, 1) without int->float convert + multiply.
    u = pltpu.bitcast((bits >> jnp.uint32(9)) | jnp.uint32(0x3F800000), jnp.float32) - 1.0
    y = (x <= u) if use_ste else (u <= x)
    o_ref[...] = y.astype(o_ref.dtype)


def _sampler_kernel_hostrng(x_ref, u_ref, o_ref, *, temperature: float, use_ste: bool):
    x = _temperature_reshape(x_ref[...].astype(jnp.float32), temperature)
    u = u_ref[...]
    y = (x <= u) if use_ste else (u <= x)
    o_ref[...] = y.astype(o_ref.dtype)


def sampler_forward(x: jax.Array, seed: int, *, temperature: float = 1.0,
                    use_ste: bool = False) -> jax.Array:
    """Pallas TPU implementation of Sampler.forward (elementwise Bernoulli sample)."""
    orig_shape = x.shape
    orig_dtype = x.dtype
    n = x.size

    tile_r, rows_p = _choose_tiling(n)
    n_pad = rows_p * _LANE

    flat = x.reshape(-1)
    if n_pad != n:
        flat = jnp.pad(flat, (0, n_pad - n))     # only when not tile-aligned
    slab = flat.reshape(rows_p, _LANE)           # metadata-only reshape when aligned

    grid = (rows_p // tile_r,)
    block = pl.BlockSpec((tile_r, _LANE), lambda i, *_: (i, 0))
    on_tpu = jax.default_backend() == "tpu"

    if on_tpu:
        kernel = functools.partial(_sampler_kernel_hwprng,
                                   temperature=float(temperature),
                                   use_ste=bool(use_ste))
        seed_arr = jnp.array([seed], dtype=jnp.int32)
        out = pl.pallas_call(
            kernel,
            out_shape=jax.ShapeDtypeStruct((rows_p, _LANE), orig_dtype),
            grid_spec=pltpu.PrefetchScalarGridSpec(
                num_scalar_prefetch=1,
                grid=grid,
                in_specs=[block],
                out_specs=block,
            ),
            compiler_params=pltpu.CompilerParams(
                dimension_semantics=("parallel",),
                has_side_effects=True,           # stateful hardware PRNG
            ),
        )(seed_arr, slab)
    else:
        # Interpret / non-TPU fallback: hardware PRNG primitives are unavailable,
        # so stream precomputed uniforms through the same tiled pipeline.
        kernel = functools.partial(_sampler_kernel_hostrng,
                                   temperature=float(temperature),
                                   use_ste=bool(use_ste))
        u_slab = jax.random.uniform(jax.random.PRNGKey(seed), (rows_p, _LANE),
                                    dtype=jnp.float32)
        out = pl.pallas_call(
            kernel,
            out_shape=jax.ShapeDtypeStruct((rows_p, _LANE), orig_dtype),
            grid_spec=pltpu.PrefetchScalarGridSpec(
                num_scalar_prefetch=0,
                grid=grid,
                in_specs=[block, block],
                out_specs=block,
            ),
            compiler_params=pltpu.CompilerParams(
                dimension_semantics=("parallel",),
            ),
        )(slab, u_slab)

    if n_pad != n:
        out = out.reshape(-1)[:n]
    return out.reshape(orig_shape)


if __name__ == "__main__":
    key = jax.random.PRNGKey(0)
    # Probabilities in [0, 1], NCHW layout: batch=2, channels=4, spatial=16x16.
    x = jax.random.uniform(key, (2, 4, 16, 16), dtype=jnp.float32)

    # Default Sampler(): temperature=1.0, use_ste=False.
    y = jax.block_until_ready(sampler_forward(x, seed=1234, temperature=1.0, use_ste=False))

    # Exercise the temperature branch and the STE branch as well.
    y_temp = jax.block_until_ready(
        sampler_forward(x, seed=5678, temperature=0.5, use_ste=False))
    y_ste = jax.block_until_ready(
        sampler_forward(x, seed=91011, temperature=1.0, use_ste=True))

    # Sanity checks: outputs are strictly {0, 1}, same shape/dtype as input,
    # and the empirical mean tracks mean(x) (Bernoulli(p=x)).
    assert y.shape == x.shape and y.dtype == x.dtype
    assert bool(jnp.all((y == 0.0) | (y == 1.0)))
    assert bool(jnp.all((y_temp == 0.0) | (y_temp == 1.0)))
    assert bool(jnp.all((y_ste == 0.0) | (y_ste == 1.0)))
    assert abs(float(jnp.mean(y)) - float(jnp.mean(x))) < 0.1
    # STE path samples (x <= rand), i.e. Bernoulli(1 - x) on average.
    assert abs(float(jnp.mean(y_ste)) - (1.0 - float(jnp.mean(x)))) < 0.1

    # TODO(synk): SamplerSTE.backward (straight-through estimator gradient) is not
    # implemented; only the forward pass is translated.
    print("KERNEL_OK")
</pallas_src>

<mosaic_0001>
module attributes {stable_mosaic.version = 11 : i64} {
  func.func @_sampler_kernel_hostrng(%arg0: i32, %arg1: memref<16x128xf32, #tpu.memory_space<vmem>>, %arg2: memref<16x128xf32, #tpu.memory_space<vmem>>, %arg3: memref<16x128xf32, #tpu.memory_space<vmem>>) attributes {dimension_semantics = [#tpu.dimension_semantics<parallel>], iteration_bounds = array<i64: 1>, scalar_prefetch = 0 : i64, scratch_operands = 0 : i64, tpu.core_type = #tpu.core_type<tc>, window_params = [{transform_indices = @transform_0, window_bounds = array<i64: 16, 128>}, {transform_indices = @transform_1, window_bounds = array<i64: 16, 128>}, {transform_indices = @transform_2, window_bounds = array<i64: 16, 128>}]} {
    %c0 = arith.constant 0 : index
    %c0_0 = arith.constant 0 : index
    %0 = vector.load %arg1[%c0, %c0_0] : memref<16x128xf32, #tpu.memory_space<vmem>>, vector<16x128xf32>
    %c0_1 = arith.constant 0 : index
    %c0_2 = arith.constant 0 : index
    %1 = vector.load %arg2[%c0_1, %c0_2] : memref<16x128xf32, #tpu.memory_space<vmem>>, vector<16x128xf32>
    %2 = arith.cmpf ole, %1, %0 : vector<16x128xf32>
    %3 = arith.extui %2 : vector<16x128xi1> to vector<16x128xi32>
    %4 = arith.sitofp %3 : vector<16x128xi32> to vector<16x128xf32>
    %c0_3 = arith.constant 0 : index
    %c0_4 = arith.constant 0 : index
    %5 = vector.load %arg3[%c0_3, %c0_4] : memref<16x128xf32, #tpu.memory_space<vmem>>, vector<16x128xf32>
    tpu.vector_store %arg3[%c0_3, %c0_4], %4 {strides = array<i32>} : memref<16x128xf32, #tpu.memory_space<vmem>>, vector<16x128xf32>,
    return
  }
  func.func @transform_0(%arg0: i32) -> (i32, i32) {
    %c0_i32 = arith.constant 0 : i32
    %c0_i32_0 = arith.constant 0 : i32
    return %arg0, %c0_i32 : i32, i32
  }
  func.func @transform_1(%arg0: i32) -> (i32, i32) {
    %c0_i32 = arith.constant 0 : i32
    %c0_i32_0 = arith.constant 0 : i32
    return %arg0, %c0_i32 : i32, i32
  }
  func.func @transform_2(%arg0: i32) -> (i32, i32) {
    %c0_i32 = arith.constant 0 : i32
    %c0_i32_0 = arith.constant 0 : i32
    return %arg0, %c0_i32 : i32, i32
  }
}

</mosaic_0001>

<llo_original>
// kernel: tpu_custom_call.1
$region0: #{tpu_custom_call.1}
  #allocation0 [shape = 'u32[]', space=smem, size = 0x4, offset = 0x4, fixed_abs, tag = 'smem constant byte address 0x4 - core index']
  #allocation1 [shape = 'u32[72,128]{1,0:T(1,128)}', space=vmem, size = 0x9000, scoped, tag = 'internal scratch']
  %s0 = inlined_call_operand.hbm [shape: f32[16,128], index: 0, kind: input, shape index: {}]
  %s1 = inlined_call_operand.hbm [shape: f32[16,128], index: 1, kind: input, shape index: {}]
  %s2 = inlined_call_operand.hbm [shape: f32[16,128], index: 2, kind: output, shape index: {}]
  %s3 = sld [smem:[#allocation0]]
  $region26: #{tpu_custom_call.1} parent=0
    _
  %s5 = ssub.s32 1, %s3
  %s6 = scalar_select 0, %s5, %s3
  $region1: #{tpu_custom_call.1} parent=0
    #allocation2 [shape = 'u8[8192]{0}', space=vmem, size = 0x2000, scoped, tag = 'input window, operand 0, single buffered']
    #allocation3 [shape = 's32[1]{0}', space=sflag, size = 0x4, scoped, tag = 'scoped memory for tpu_custom_call.1']
    #allocation4 [shape = 's32[1]{0}', space=sflag, size = 0x4, scoped, tag = 'scoped memory for tpu_custom_call.1']
    #allocation5 [shape = 'u8[8192]{0}', space=vmem, size = 0x2000, scoped, tag = 'input window, operand 1, single buffered']
    #allocation6 [shape = 's32[1]{0}', space=sflag, size = 0x4, scoped, tag = 'scoped memory for tpu_custom_call.1']
    #allocation7 [shape = 'u8[8192]{0}', space=vmem, size = 0x2000, scoped, tag = 'output window, operand 0, single buffered']
    %7 = vsyncpa [#allocation3], 0
    %8 = vsyncpa [#allocation6], 0
    %9 = vsyncpa [#allocation4], 0
    // Predicated region
    $region2: #{tpu_custom_call.1} parent=1 // pred_check
      _
    $region3: #{tpu_custom_call.1} parent=1 // pred_check_branch
      %11 = sbr.rel (0) target = $region5
    $region4: #{tpu_custom_call.1} parent=1 // pred_region
      %13 = vsyncadd [#allocation3], 0
      %s14 = sshll.u32 %s0, 4
      %s15 = int_to_ptr.hbm [resolvable:$true] %s14
      %s16 = sshll.u32 [#allocation2], 4
      %s17 = int_to_ptr.vmem [resolvable:$true] %s16
      %22 = dma.hbm_to_vmem [thread:$0]  %s15, 256, %s17, [#allocation3], 128, 128, 8
    $region5: #{tpu_custom_call.1} parent=1 // pred_fallthru
      _
    // Predicated region
    $region6: #{tpu_custom_call.1} parent=1 // pred_check
      _
    $region7: #{tpu_custom_call.1} parent=1 // pred_check_branch
      %24 = sbr.rel (0) target = $region9
    $region8: #{tpu_custom_call.1} parent=1 // pred_region
      %26 = vsyncadd [#allocation6], 0
      %s27 = sshll.u32 %s1, 4
      %s28 = int_to_ptr.hbm [resolvable:$true] %s27
      %s29 = sshll.u32 [#allocation5], 4
      %s30 = int_to_ptr.vmem [resolvable:$true] %s29
      %35 = dma.hbm_to_vmem [thread:$0]  %s28, 256, %s30, [#allocation6], 128, 128, 8
    $region9: #{tpu_custom_call.1} parent=1 // pred_fallthru
      _
    // Predicated region
    $region10: #{tpu_custom_call.1} parent=1 // pred_check
      _
    $region11: #{tpu_custom_call.1} parent=1 // pred_check_branch
      %37 = sbr.rel (0) target = $region13
    $region12: #{tpu_custom_call.1} parent=1 // pred_region
      %39 = dma.done [#allocation3], 256
    $region13: #{tpu_custom_call.1} parent=1 // pred_fallthru
      _
    // Predicated region
    $region14: #{tpu_custom_call.1} parent=1 // pred_check
      _
    $region15: #{tpu_custom_call.1} parent=1 // pred_check_branch
      %41 = sbr.rel (0) target = $region17
    $region16: #{tpu_custom_call.1} parent=1 // pred_region
      %43 = dma.done [#allocation6], 256
    $region17: #{tpu_custom_call.1} parent=1 // pred_fallthru
      _
    %v44 = vld [vmem:[#allocation2] sm:$0xff]
    %v45 = vld [vmem:[#allocation2 + $0x8] sm:$0xff]
    %v46 = vld [vmem:[#allocation5] sm:$0xff]
    %v47 = vld [vmem:[#allocation5 + $0x8] sm:$0xff]
    %vm48 = vcmp.le.f32.partialorder %v46, %v44
    %vm49 = vcmp.le.f32.partialorder %v47, %v45
    %v50 = vsel %vm48, 1, 0
    %v51 = vsel %vm49, 1, 0
    %v52 = vcvt.s32.f32 %v50
    %v53 = vcvt.s32.f32 %v51
    %54 = vst [vmem:[#allocation7] sm:$0xff] %v52
    %55 = vst [vmem:[#allocation7 + $0x8] sm:$0xff] %v53
    // Predicated region
    $region18: #{tpu_custom_call.1} parent=1 // pred_check
      _
    $region19: #{tpu_custom_call.1} parent=1 // pred_check_branch
      %57 = sbr.rel (0) target = $region21
    $region20: #{tpu_custom_call.1} parent=1 // pred_region
      %59 = vsyncadd [#allocation4], 0
      %s60 = sshll.u32 [#allocation7], 4
      %s61 = int_to_ptr.vmem [resolvable:$true] %s60
      %s62 = sshll.u32 %s2, 4
      %s63 = int_to_ptr.hbm [resolvable:$true] %s62
      %68 = dma.vmem_to_hbm [thread:$0]  %s61, 256, %s63, [#allocation4], 128, 128, 8
    $region21: #{tpu_custom_call.1} parent=1 // pred_fallthru
      _
    // Predicated region
    $region22: #{tpu_custom_call.1} parent=1 // pred_check
      _
    $region23: #{tpu_custom_call.1} parent=1 // pred_check_branch
      %70 = sbr.rel (0) target = $region25
    $region24: #{tpu_custom_call.1} parent=1 // pred_region
      %72 = dma.done [#allocation4], 256
    $region25: #{tpu_custom_call.1} parent=1 // pred_fallthru
      _
    %73 = vsyncpa [#allocation3], 1
    %74 = vsyncpa [#allocation6], 1
    %75 = vsyncpa [#allocation4], 1

</llo_original>
